<compile_context>
chip_gen: v5e
topology: v5e:2x2
jax: 0.10.0
libtpu: 0.0.40
codegen_flags: <defaults>
</compile_context>

<pallas_src>
import math
import numpy as np
import jax
import jax.numpy as jnp
from jax.experimental import pallas as pl
from jax.experimental.pallas import tpu as pltpu


def build_M(dim: int) -> np.ndarray:
    """Deterministic moment matrix from _MK.__init__ (built in float64 like torch)."""
    M = np.zeros((dim, dim), dtype=np.float64)
    for i in range(dim):
        M[i] = (np.arange(dim) - (dim - 1) // 2) ** i / math.factorial(i)
    return M


# ---------------------------------------------------------------------------
# Module-semantic (un-batched) path: k of shape (1, 1, dim).
#   out[i] = sum_j M[i, j] * k[j]
# VPU broadcast-multiply + XLU lane reduce; no MXU, no transpose, no grid.
# (Overhead-bound by construction; kept only to mirror K2M.forward exactly.)
# ---------------------------------------------------------------------------
def k2m_matvec_kernel(m_ref, k_ref, o_ref):
    # m_ref: (dim, dim), k_ref: (1, dim), o_ref: (dim, 1)
    prod = m_ref[...] * k_ref[...]                       # VPU, k broadcast over sublanes
    o_ref[...] = jnp.sum(prod, axis=-1, keepdims=True)   # XLU cross-lane reduce


def k2m_forward(M: jax.Array, k: jax.Array) -> jax.Array:
    """Module forward: M (dim, dim) f32, k (1, 1, dim) f32 -> (1, 1, dim) f32."""
    dim = M.shape[0]
    assert k.shape == (1, 1, dim)
    k2d = k.reshape(1, dim)  # order-preserving reshape outside the kernel

    out = pl.pallas_call(
        k2m_matvec_kernel,
        out_shape=jax.ShapeDtypeStruct((dim, 1), k.dtype),
        # No grid, no index_maps: whole arrays resident in VMEM, no pipeline setup.
        in_specs=[
            pl.BlockSpec(memory_space=pltpu.MemorySpace.VMEM),
            pl.BlockSpec(memory_space=pltpu.MemorySpace.VMEM),
        ],
        out_specs=pl.BlockSpec(memory_space=pltpu.MemorySpace.VMEM),
    )(M, k2d)

    return out.reshape(1, 1, dim)


# ---------------------------------------------------------------------------
# Batched path: N filters at once, stored as K_T of shape (dim, N) end-to-end
# (no wrapper-side transpose), so the large batch axis N sits on the 128-lane
# axis and the output is lane-dense.
#   out[:, n] = M @ K_T[:, n]
# One MXU matmul per (dim, tile_n) tile; M's contraction axis 1 hits K_T's
# axis 0 directly, so no transpose is emitted inside the kernel.
# ---------------------------------------------------------------------------
def k2m_cols_kernel(m_ref, kt_ref, o_ref):
    # m_ref: (dim, dim); kt_ref: (dim, tile_n); o_ref: (dim, tile_n)
    o_ref[...] = jnp.dot(
        m_ref[...], kt_ref[...], preferred_element_type=jnp.float32
    ).astype(o_ref.dtype)


def _pick_tile_n(N: int, max_tile: int = 8192) -> int:
    """Large lane tile (fewer ~0.35us grid steps) but keep >= 2 grid steps when
    N allows so the 'parallel' axis shards across both v7x TensorCores."""
    half = -(-N // 2)                      # ceil(N / 2)
    half_aligned = -(-half // 128) * 128   # round up to 128-lane multiple
    return int(min(max_tile, max(128, half_aligned)))


def k2m_batched(M: jax.Array, kT: jax.Array, *, tile_n: int | None = None) -> jax.Array:
    """M (dim, dim) f32, kT (dim, N) f32 -> (dim, N) f32 with out[:, n] = M @ kT[:, n].

    N need not be a multiple of tile_n: the grid uses pl.cdiv and Pallas masks
    the writeback of the final partial block.
    """
    dim, N = kT.shape
    assert M.shape == (dim, dim)
    if tile_n is None:
        tile_n = _pick_tile_n(N)
    grid_n = pl.cdiv(N, tile_n)

    return pl.pallas_call(
        k2m_cols_kernel,
        out_shape=jax.ShapeDtypeStruct((dim, N), kT.dtype),
        grid=(grid_n,),
        in_specs=[
            pl.BlockSpec((dim, dim), lambda n: (0, 0)),     # full (small) M block
            pl.BlockSpec((dim, tile_n), lambda n: (0, n)),  # lane-dense filter tile
        ],
        out_specs=pl.BlockSpec((dim, tile_n), lambda n: (0, n)),
        compiler_params=pltpu.CompilerParams(
            dimension_semantics=("parallel",),
        ),
    )(M, kT)


if __name__ == "__main__":
    dim = 8  # kernel size, consistent with k of shape (1, 1, dim)

    M_np = build_M(dim)                        # float64, like the torch buffer
    M = jnp.asarray(M_np, dtype=jnp.float32)   # TPU compute dtype

    key = jax.random.PRNGKey(0)
    k_key, kb1_key, kb2_key = jax.random.split(key, 3)

    # --- module-semantic forward: k of shape (1, 1, dim) ---
    k = jax.random.normal(k_key, (1, 1, dim), dtype=jnp.float32)
    out = jax.block_until_ready(k2m_forward(M, k))
    assert out.shape == (1, 1, dim)

    # Reference in float64 (mirrors torch.tensordot + permute on the f64 buffer).
    k_vec64 = np.asarray(k, dtype=np.float64).reshape(dim)
    ref = (M_np @ k_vec64).reshape(1, 1, dim)
    np.testing.assert_allclose(np.asarray(out), ref, rtol=1e-4, atol=1e-5)

    # --- batched, lane-dense variant: N filters at once, N on the lane axis ---
    # Neither N is a multiple of the chosen tile, exercising cdiv + masked last block,
    # and both give grid length 2 (both v7x TensorCores busy).
    for N, kb_key in ((384, kb1_key), (5000, kb2_key)):
        kT = jax.random.normal(kb_key, (dim, N), dtype=jnp.float32)
        out_b = jax.block_until_ready(k2m_batched(M, kT))
        assert out_b.shape == (dim, N)
        ref_b = M_np @ np.asarray(kT, dtype=np.float64)
        np.testing.assert_allclose(np.asarray(out_b), ref_b, rtol=1e-4, atol=1e-4)

    print("KERNEL_OK")
</pallas_src>

<mosaic_0001>
module attributes {stable_mosaic.version = 11 : i64} {
  func.func @k2m_matvec_kernel(%arg0: memref<8x8xf32, #tpu.memory_space<vmem>>, %arg1: memref<1x8xf32, #tpu.memory_space<vmem>>, %arg2: memref<8x1xf32, #tpu.memory_space<vmem>>) attributes {dimension_semantics = [], scalar_prefetch = 0 : i64, scratch_operands = 0 : i64, tpu.core_type = #tpu.core_type<tc>} {
    %c0 = arith.constant 0 : index
    %c0_0 = arith.constant 0 : index
    %0 = vector.load %arg0[%c0, %c0_0] : memref<8x8xf32, #tpu.memory_space<vmem>>, vector<8x8xf32>
    %c0_1 = arith.constant 0 : index
    %c0_2 = arith.constant 0 : index
    %1 = vector.load %arg1[%c0_1, %c0_2] : memref<1x8xf32, #tpu.memory_space<vmem>>, vector<1x8xf32>
    %2 = vector.broadcast %1 : vector<1x8xf32> to vector<8x8xf32>
    %3 = arith.mulf %0, %2 : vector<8x8xf32>
    %cst = arith.constant dense<0.000000e+00> : vector<8xf32>
    %4 = vector.multi_reduction <add>, %3, %cst [1] : vector<8x8xf32> to vector<8xf32>
    %5 = vector.shape_cast %4 : vector<8xf32> to vector<8x1xf32>
    %c0_3 = arith.constant 0 : index
    %c0_4 = arith.constant 0 : index
    %6 = vector.load %arg2[%c0_3, %c0_4] : memref<8x1xf32, #tpu.memory_space<vmem>>, vector<8x1xf32>
    tpu.vector_store %arg2[%c0_3, %c0_4], %5 {strides = array<i32>} : memref<8x1xf32, #tpu.memory_space<vmem>>, vector<8x1xf32>,
    return
  }
}

</mosaic_0001>

<llo_original>
// kernel: tpu_custom_call.1
$region0: #{tpu_custom_call.1}
  #allocation0 [shape = 'u32[]', space=smem, size = 0x4, offset = 0x4, fixed_abs, tag = 'smem constant byte address 0x4 - core index']
  #allocation1 [shape = 'u32[72,128]{1,0:T(1,128)}', space=vmem, size = 0x9000, scoped, tag = 'internal scratch']
  %s0 = inlined_call_operand.hbm [shape: f32[8,8], index: 0, kind: input, shape index: {}]
  %s1 = inlined_call_operand.hbm [shape: f32[1,8], index: 1, kind: input, shape index: {}]
  %s2 = inlined_call_operand.vmem [shape: f32[8,1], index: 2, kind: output, shape index: {}]
  %s3 = sld [smem:[#allocation0]]
  $region26: #{tpu_custom_call.1} parent=0
    _
  %s5 = ssub.s32 1, %s3
  %s6 = scalar_select 0, %s5, %s3
  $region1: #{tpu_custom_call.1} parent=0
    #allocation2 [shape = 'u8[4096]{0}', space=vmem, size = 0x1000, scoped, tag = 'input window, operand 0, single buffered']
    #allocation3 [shape = 's32[1]{0}', space=sflag, size = 0x4, scoped, tag = 'scoped memory for tpu_custom_call.1']
    #allocation4 [shape = 'u8[512]{0}', space=vmem, size = 0x400, scoped, tag = 'input window, operand 1, single buffered']
    #allocation5 [shape = 's32[1]{0}', space=sflag, size = 0x4, scoped, tag = 'scoped memory for tpu_custom_call.1']
    %7 = vsyncpa [#allocation3], 0
    %8 = vsyncpa [#allocation5], 0
    // Predicated region
    $region2: #{tpu_custom_call.1} parent=1 // pred_check
      _
    $region3: #{tpu_custom_call.1} parent=1 // pred_check_branch
      %10 = sbr.rel (0) target = $region5
    $region4: #{tpu_custom_call.1} parent=1 // pred_region
      %12 = vsyncadd [#allocation3], 0
      %s14 = sshll.u32 %s0, 4
      %s15 = int_to_ptr.hbm [resolvable:$true] %s14
      %s16 = sshll.u32 [#allocation2], 4
      %s17 = int_to_ptr.vmem [resolvable:$true] %s16
      %19 = dma.hbm_to_vmem [thread:$0]  %s15, 128, %s17, [#allocation3]
    $region5: #{tpu_custom_call.1} parent=1 // pred_fallthru
      _
    // Predicated region
    $region6: #{tpu_custom_call.1} parent=1 // pred_check
      _
    $region7: #{tpu_custom_call.1} parent=1 // pred_check_branch
      %21 = sbr.rel (0) target = $region9
    $region8: #{tpu_custom_call.1} parent=1 // pred_region
      %23 = vsyncadd [#allocation5], 0
      %s25 = sshll.u32 %s1, 4
      %s26 = int_to_ptr.hbm [resolvable:$true] %s25
      %s27 = sshll.u32 [#allocation4], 4
      %s28 = int_to_ptr.vmem [resolvable:$true] %s27
      %30 = dma.hbm_to_vmem [thread:$0]  %s26, 16, %s28, [#allocation5]
    $region9: #{tpu_custom_call.1} parent=1 // pred_fallthru
      _
    // Predicated region
    $region10: #{tpu_custom_call.1} parent=1 // pred_check
      _
    $region11: #{tpu_custom_call.1} parent=1 // pred_check_branch
      %32 = sbr.rel (0) target = $region13
    $region12: #{tpu_custom_call.1} parent=1 // pred_region
      %34 = dma.done [#allocation3], 128
    $region13: #{tpu_custom_call.1} parent=1 // pred_fallthru
      _
    // Predicated region
    $region14: #{tpu_custom_call.1} parent=1 // pred_check
      _
    $region15: #{tpu_custom_call.1} parent=1 // pred_check_branch
      %36 = sbr.rel (0) target = $region17
    $region16: #{tpu_custom_call.1} parent=1 // pred_region
      %38 = dma.done [#allocation5], 16
    $region17: #{tpu_custom_call.1} parent=1 // pred_fallthru
      _
    %v39 = vld [vmem:[#allocation2] sm:$0xff]
    %v40 = vld [vmem:[#allocation4] sm:$0x1]
    %v42 = vperm.slane %v40, 0
    %v44 = vmul.f32 %v39, %v42
    %vm45 = vcmask 64512
    %v46 = vsel %vm45, %v44, 0.0
    %47 = vadd.xlane.f32.xlu0 %v46
    %v48 = vpop.xlane.xlu0 %47
    %vm49 = vcmask 7168
    %50 = vst.msk [vmem:[%s2] sm:$0xff] %vm49, %v48
    // Predicated region
    $region18: #{tpu_custom_call.1} parent=1 // pred_check
      _
    $region19: #{tpu_custom_call.1} parent=1 // pred_check_branch
      %52 = sbr.rel (0) target = $region21
    $region20: #{tpu_custom_call.1} parent=1 // pred_region
      _
    $region21: #{tpu_custom_call.1} parent=1 // pred_fallthru
      _
    // Predicated region
    $region22: #{tpu_custom_call.1} parent=1 // pred_check
      _
    $region23: #{tpu_custom_call.1} parent=1 // pred_check_branch
      %54 = sbr.rel (0) target = $region25
    $region24: #{tpu_custom_call.1} parent=1 // pred_region
      _
    $region25: #{tpu_custom_call.1} parent=1 // pred_fallthru
      _
    %55 = vsyncpa [#allocation3], 1
    %56 = vsyncpa [#allocation5], 1

</llo_original>
